<compile_context>
chip_gen: v7x
topology: tpu7x:2x2x1
jax: 0.10.0
libtpu: 0.0.40
codegen_flags: <defaults>
</compile_context>

<pallas_src>
import functools

import jax
import jax.numpy as jnp
from jax.experimental import pallas as pl
from jax.experimental.pallas import tpu as pltpu


def mlp1_kernel(x_ref, w1_ref, b1_ref, w2_ref, b2_ref, w3_ref, b3_ref, o_ref):
    # x_ref: (TR, fold*D). Weights are block-diagonal so each sublane row
    # carries `fold` independent input rows -> full-lane vregs everywhere.
    h1 = jnp.tanh(
        jnp.dot(x_ref[...], w1_ref[...], preferred_element_type=jnp.float32)
        + b1_ref[...]
    )
    h2 = jnp.tanh(
        jnp.dot(h1, w2_ref[...], preferred_element_type=jnp.float32)
        + b2_ref[...]
    )
    y = jnp.dot(h2, w3_ref[...], preferred_element_type=jnp.float32) + b3_ref[0]
    o_ref[...] = y            # (TR, fold); row-major flatten == row order


def _block_diag(w, fold):
    """(din, dout) -> (fold*din, fold*dout) with `fold` copies on the diagonal."""
    din, dout = w.shape
    eye = jnp.eye(fold, dtype=w.dtype)
    return jnp.einsum("ab,ij->aibj", eye, w).reshape(fold * din, fold * dout)


@functools.partial(jax.jit, static_argnames=("tile_m", "fold", "vmem_limit_bytes"))
def mlp1_forward(x, params, *, tile_m=16384, fold=8,
                 vmem_limit_bytes=48 * 1024 * 1024):
    """x: (T, N, input_size) float32 -> (T*N,) float32 (matches .flatten()).

    tile_m: input rows per grid step (keep a multiple of 64; sweep 8K-32K,
            cap around 8K-16K on v7x's 64 MiB/TC VMEM).
    fold:   rows packed per sublane row (8 -> full 128-lane vregs for D=16).
    """
    w1, b1, w2, b2, w3, b3 = params
    T, N, D = x.shape
    M = T * N
    H = w1.shape[1]

    # ---- fold `fold` consecutive rows into one sublane row --------------------
    # Free reshape of contiguous memory when M % fold == 0; otherwise pad by
    # < fold rows (callers should prefer M % 8 == 0 to keep this zero-copy).
    x2d = x.reshape(M, D)
    rem = M % fold
    if rem:
        x2d = jnp.pad(x2d, ((0, fold - rem), (0, 0)))
    m_rows = x2d.shape[0] // fold
    x_f = x2d.reshape(m_rows, fold * D)

    # ---- block-diagonal weights (tiny; built once per call) -------------------
    dm, hm = fold * D, fold * H
    w1_f = _block_diag(w1, fold)                  # (dm, hm)
    w2_f = _block_diag(w2, fold)                  # (hm, hm)
    w3_f = _block_diag(w3, fold)                  # (hm, fold)
    b1_f = jnp.tile(b1, fold).reshape(1, hm)
    b2_f = jnp.tile(b2, fold).reshape(1, hm)
    b3_f = b3.reshape(1)                          # scalar -> SMEM

    # ---- row tiling over folded rows -------------------------------------------
    tr = max(8, (tile_m // fold) // 8 * 8)        # sublane-aligned tile
    if tr >= m_rows:
        tr = m_rows                               # single full-extent block
    num_tiles = pl.cdiv(m_rows, tr)               # last block may be partial

    out = pl.pallas_call(
        mlp1_kernel,
        out_shape=jax.ShapeDtypeStruct((m_rows, fold), jnp.float32),
        grid=(num_tiles,),
        in_specs=[
            pl.BlockSpec((tr, dm), lambda i: (i, 0)),        # x row tiles (streamed)
            pl.BlockSpec((dm, hm), lambda i: (0, 0)),        # W1 (resident)
            pl.BlockSpec((1, hm), lambda i: (0, 0)),         # b1
            pl.BlockSpec((hm, hm), lambda i: (0, 0)),        # W2
            pl.BlockSpec((1, hm), lambda i: (0, 0)),         # b2
            pl.BlockSpec((hm, fold), lambda i: (0, 0)),      # W3
            pl.BlockSpec(memory_space=pltpu.MemorySpace.SMEM),  # b3 scalar
        ],
        out_specs=pl.BlockSpec((tr, fold), lambda i: (i, 0)),
        compiler_params=pltpu.CompilerParams(
            dimension_semantics=("parallel",),
            vmem_limit_bytes=vmem_limit_bytes,
        ),
    )(x_f, w1_f, b1_f, w2_f, b2_f, w3_f, b3_f)

    # Row-major flatten reproduces original row order; drop any padded rows.
    return out.reshape(-1)[:M]


def init_params(key, input_size, hidden_size):
    """Deterministic init mimicking torch.nn.Linear uniform(-1/sqrt(fan_in), +)."""
    ks = jax.random.split(key, 6)

    def lin(kw, kb, fan_in, fan_out):
        bound = 1.0 / jnp.sqrt(fan_in)
        w = jax.random.uniform(kw, (fan_in, fan_out), jnp.float32, -bound, bound)
        b = jax.random.uniform(kb, (fan_out,), jnp.float32, -bound, bound)
        return w, b

    w1, b1 = lin(ks[0], ks[1], input_size, hidden_size)
    w2, b2 = lin(ks[2], ks[3], hidden_size, hidden_size)
    w3, b3 = lin(ks[4], ks[5], hidden_size, 1)
    return (w1, b1, w2, b2, w3, b3)


def ref_forward(x, params):
    w1, b1, w2, b2, w3, b3 = params
    h = jnp.tanh(x.reshape(-1, x.shape[-1]) @ w1 + b1)
    h = jnp.tanh(h @ w2 + b2)
    return (h @ w3 + b3).reshape(-1)


if __name__ == "__main__":
    key = jax.random.PRNGKey(0)
    k_x, k_p, k_x2 = jax.random.split(key, 3)

    T, N, input_size, hidden_size = 2, 8, 16, 32
    x = jax.random.normal(k_x, (T, N, input_size), dtype=jnp.float32)
    params = init_params(k_p, input_size, hidden_size)

    # 1) small case: M = 16 (divisible by fold -> zero-copy relayout, 1 tile)
    out = jax.block_until_ready(mlp1_forward(x, params))
    ref = ref_forward(x, params)
    assert out.shape == (T * N,), out.shape
    assert jnp.allclose(out, ref, atol=5e-3), float(jnp.max(jnp.abs(out - ref)))

    # 2) M = 1500 (not a multiple of 8 -> tiny <8-row pad), multiple row tiles
    #    with a partial last block (tile_m=512 -> tr=64, grid=3).
    T2, N2 = 5, 300
    x2 = jax.random.normal(k_x2, (T2, N2, input_size), dtype=jnp.float32)
    out2 = jax.block_until_ready(mlp1_forward(x2, params, tile_m=512))
    ref2 = ref_forward(x2, params)
    assert out2.shape == (T2 * N2,), out2.shape
    assert jnp.allclose(out2, ref2, atol=5e-3), float(jnp.max(jnp.abs(out2 - ref2)))

    # 3) same data, default large tile (single full-extent block)
    out3 = jax.block_until_ready(mlp1_forward(x2, params))
    assert jnp.allclose(out3, ref2, atol=5e-3), float(jnp.max(jnp.abs(out3 - ref2)))

    print("KERNEL_OK")
</pallas_src>

<mosaic_0001>
module attributes {stable_mosaic.version = 11 : i64} {
  func.func @mlp1_kernel(%arg0: i32, %arg1: memref<2x128xf32, #tpu.memory_space<vmem>>, %arg2: memref<128x256xf32, #tpu.memory_space<vmem>>, %arg3: memref<1x256xf32, #tpu.memory_space<vmem>>, %arg4: memref<256x256xf32, #tpu.memory_space<vmem>>, %arg5: memref<1x256xf32, #tpu.memory_space<vmem>>, %arg6: memref<256x8xf32, #tpu.memory_space<vmem>>, %arg7: memref<1xf32, #tpu.memory_space<smem>>, %arg8: memref<2x8xf32, #tpu.memory_space<vmem>>) attributes {dimension_semantics = [#tpu.dimension_semantics<parallel>], iteration_bounds = array<i64: 1>, scalar_prefetch = 0 : i64, scratch_operands = 0 : i64, tpu.core_type = #tpu.core_type<tc>, window_params = [{transform_indices = @transform_0, window_bounds = array<i64: 2, 128>}, {pipeline_mode = #tpu.pipeline_mode<synchronous>, transform_indices = @transform_1, window_bounds = array<i64: 128, 256>}, {pipeline_mode = #tpu.pipeline_mode<synchronous>, transform_indices = @transform_2, window_bounds = array<i64: 1, 256>}, {pipeline_mode = #tpu.pipeline_mode<synchronous>, transform_indices = @transform_3, window_bounds = array<i64: 256, 256>}, {pipeline_mode = #tpu.pipeline_mode<synchronous>, transform_indices = @transform_4, window_bounds = array<i64: 1, 256>}, {pipeline_mode = #tpu.pipeline_mode<synchronous>, transform_indices = @transform_5, window_bounds = array<i64: 256, 8>}, {transform_indices = @transform_6, window_bounds = array<i64: 1>}, {transform_indices = @transform_7, window_bounds = array<i64: 2, 8>}]} {
    %c0 = arith.constant 0 : index
    %c0_0 = arith.constant 0 : index
    %0 = vector.load %arg1[%c0, %c0_0] : memref<2x128xf32, #tpu.memory_space<vmem>>, vector<2x128xf32>
    %c0_1 = arith.constant 0 : index
    %c0_2 = arith.constant 0 : index
    %1 = vector.load %arg2[%c0_1, %c0_2] : memref<128x256xf32, #tpu.memory_space<vmem>>, vector<128x256xf32>
    %cst = arith.constant dense<0.000000e+00> : vector<2x256xf32>
    %2 = tpu.matmul %0, %1, %cst {dimension_numbers = #tpu.dot_dimension_numbers<[1], [0], [0], [1], [0, 0, 1, 1], [], []>} : vector<2x128xf32>, vector<128x256xf32>, vector<2x256xf32> -> vector<2x256xf32>
    %c0_3 = arith.constant 0 : index
    %c0_4 = arith.constant 0 : index
    %3 = vector.load %arg3[%c0_3, %c0_4] : memref<1x256xf32, #tpu.memory_space<vmem>>, vector<1x256xf32>
    %4 = vector.broadcast %3 : vector<1x256xf32> to vector<2x256xf32>
    %5 = arith.addf %2, %4 : vector<2x256xf32>
    %6 = math.tanh %5 : vector<2x256xf32>
    %c0_5 = arith.constant 0 : index
    %c0_6 = arith.constant 0 : index
    %7 = vector.load %arg4[%c0_5, %c0_6] : memref<256x256xf32, #tpu.memory_space<vmem>>, vector<256x256xf32>
    %cst_7 = arith.constant dense<0.000000e+00> : vector<2x256xf32>
    %8 = tpu.matmul %6, %7, %cst_7 {dimension_numbers = #tpu.dot_dimension_numbers<[1], [0], [0], [1], [0, 0, 1, 1], [], []>} : vector<2x256xf32>, vector<256x256xf32>, vector<2x256xf32> -> vector<2x256xf32>
    %c0_8 = arith.constant 0 : index
    %c0_9 = arith.constant 0 : index
    %9 = vector.load %arg5[%c0_8, %c0_9] : memref<1x256xf32, #tpu.memory_space<vmem>>, vector<1x256xf32>
    %10 = vector.broadcast %9 : vector<1x256xf32> to vector<2x256xf32>
    %11 = arith.addf %8, %10 : vector<2x256xf32>
    %12 = math.tanh %11 : vector<2x256xf32>
    %c0_10 = arith.constant 0 : index
    %c0_11 = arith.constant 0 : index
    %13 = vector.load %arg6[%c0_10, %c0_11] : memref<256x8xf32, #tpu.memory_space<vmem>>, vector<256x8xf32>
    %cst_12 = arith.constant dense<0.000000e+00> : vector<2x8xf32>
    %14 = tpu.matmul %12, %13, %cst_12 {dimension_numbers = #tpu.dot_dimension_numbers<[1], [0], [0], [1], [0, 0, 1, 1], [], []>} : vector<2x256xf32>, vector<256x8xf32>, vector<2x8xf32> -> vector<2x8xf32>
    %c0_13 = arith.constant 0 : index
    %15 = memref.load %arg7[%c0_13] : memref<1xf32, #tpu.memory_space<smem>>
    %16 = vector.broadcast %15 : f32 to vector<2x8xf32>
    %17 = arith.addf %14, %16 : vector<2x8xf32>
    %c0_14 = arith.constant 0 : index
    %c0_15 = arith.constant 0 : index
    %18 = vector.load %arg8[%c0_14, %c0_15] : memref<2x8xf32, #tpu.memory_space<vmem>>, vector<2x8xf32>
    tpu.vector_store %arg8[%c0_14, %c0_15], %17 {strides = array<i32>} : memref<2x8xf32, #tpu.memory_space<vmem>>, vector<2x8xf32>,
    return
  }
  func.func @transform_0(%arg0: i32) -> (i32, i32) {
    %c0_i32 = arith.constant 0 : i32
    %c0_i32_0 = arith.constant 0 : i32
    return %arg0, %c0_i32 : i32, i32
  }
  func.func @transform_1(%arg0: i32) -> (i32, i32) {
    %c0_i32 = arith.constant 0 : i32
    %c0_i32_0 = arith.constant 0 : i32
    %c0_i32_1 = arith.constant 0 : i32
    return %c0_i32, %c0_i32_0 : i32, i32
  }
  func.func @transform_2(%arg0: i32) -> (i32, i32) {
    %c0_i32 = arith.constant 0 : i32
    %c0_i32_0 = arith.constant 0 : i32
    %c0_i32_1 = arith.constant 0 : i32
    return %c0_i32, %c0_i32_0 : i32, i32
  }
  func.func @transform_3(%arg0: i32) -> (i32, i32) {
    %c0_i32 = arith.constant 0 : i32
    %c0_i32_0 = arith.constant 0 : i32
    %c0_i32_1 = arith.constant 0 : i32
    return %c0_i32, %c0_i32_0 : i32, i32
  }
  func.func @transform_4(%arg0: i32) -> (i32, i32) {
    %c0_i32 = arith.constant 0 : i32
    %c0_i32_0 = arith.constant 0 : i32
    %c0_i32_1 = arith.constant 0 : i32
    return %c0_i32, %c0_i32_0 : i32, i32
  }
  func.func @transform_5(%arg0: i32) -> (i32, i32) {
    %c0_i32 = arith.constant 0 : i32
    %c0_i32_0 = arith.constant 0 : i32
    %c0_i32_1 = arith.constant 0 : i32
    return %c0_i32, %c0_i32_0 : i32, i32
  }
  func.func @transform_6(%arg0: i32) -> i32 {
    %c0_i32 = arith.constant 0 : i32
    %c0_i32_0 = arith.constant 0 : i32
    return %c0_i32 : i32
  }
  func.func @transform_7(%arg0: i32) -> (i32, i32) {
    %c0_i32 = arith.constant 0 : i32
    %c0_i32_0 = arith.constant 0 : i32
    return %arg0, %c0_i32 : i32, i32
  }
}

</mosaic_0001>

<llo_original>
// kernel: tile.13
$region0: #{tile.13}
  #allocation0 [shape = 's32[1]{0}', space=sflag, size = 0x4, scoped, tag = 'scoped memory for tile.13']
  %s0 = inlined_call_operand.vmem [shape: f32[32], index: 0, kind: input, shape index: {}]
  %s1 = inlined_call_operand.vmem [shape: f32[8,32], index: 1, kind: output, shape index: {}]
  // Predicated region
  $region2: #{tile.13} parent=0 // pred_check
    _
  $region3: #{tile.13} parent=0 // pred_check_branch
    %3 = sbr.rel (0) target = $region5
  $region4: #{tile.13} parent=0 // pred_region
    _
  $region5: #{tile.13} parent=0 // pred_fallthru
    _
  %v4 = vld [vmem:[%s0] ss:$0 sm:$0xff]
  %5 = vst [vmem:[%s1] sm:$0xff] %v4

// kernel: tile.14
$region0: #{tile.14}
  %s0 = inlined_call_operand.vmem [shape: f32[8,32], index: 0, kind: input, shape index: {}]
  %s1 = inlined_call_operand.vmem [shape: f32[1,256], index: 1, kind: output, shape index: {}]
  $region1: #{tile.14} parent=0
    #allocation0 [shape = 'u8[8192]{0}', space=vmem, size = 0x2000, scoped, tag = 'scoped mem for output reshape']
    %s2 = smov 3
    %v3 = vld [vmem:[%s0] ss:$4 sm:%s2]
    %vm4 = vcmask 261120
    %5 = vst.msk [vmem:[#allocation0] ss:$8 sm:$0x3] %vm4, %v3
    %s6 = scalar_lea.vmem %s0, 3
    %s7 = smov 3
    %v8 = vld [vmem:[%s6] ss:$4 sm:%s7]
    %9 = vrot.lane.b32.xlu0 %v8, 96
    %v10 = vpop.permute.xlu0 %9
    %vm11 = vcmask 1048320
    %12 = vst.msk [vmem:[#allocation0] ss:$8 sm:$0x3] %vm11, %v10
    %s13 = scalar_lea.vmem %s0, 2
    %s14 = smov 3
    %v15 = vld [vmem:[%s13] ss:$4 sm:%s14]
    %16 = vrot.lane.b32.xlu0 %v15, 64
    %v17 = vpop.permute.xlu0 %16
    %vm18 = vcmask 785920
    %19 = vst.msk [vmem:[#allocation0] ss:$8 sm:$0x3] %vm18, %v17
    %s20 = scalar_lea.vmem %s0, 1
    %s21 = smov 3
    %v22 = vld [vmem:[%s20] ss:$4 sm:%s21]
    %23 = vrot.lane.b32.xlu0 %v22, 32
    %v24 = vpop.permute.xlu0 %23
    %vm25 = vcmask 523520
    %26 = vst.msk [vmem:[#allocation0] ss:$8 sm:$0x3] %vm25, %v24
    %s28 = sshllo.u32 0, 1
    %v30 = vld [vmem:[#allocation0] sm:%s28]
    %s31 = sshllo.u32 0, 1
    %32 = vst [vmem:[%s1] sm:%s31] %v30
    %s33 = scalar_lea.vmem [#allocation0], 8
    %v34 = vld [vmem:[%s33] sm:%s28]
    %s35 = sshllo.u32 0, 1
    %s36 = scalar_lea.vmem %s1, 1
    %37 = vst [vmem:[%s36] sm:%s35] %v34

// kernel: mlp1_forward.1
$region0: #{mlp1_forward.1}
  #allocation0 [shape = 'u32[]', space=smem, size = 0x4, offset = 0x4, fixed_abs, tag = 'smem constant byte address 0x4 - core index']
  #allocation1 [shape = 'u32[144,128]{1,0:T(1,128)}', space=vmem, size = 0x12000, scoped, tag = 'internal scratch']
  #allocation2 [shape = 'f32[1]{0:T(128)S(6)}', space=smem, size = 0x200, scoped, tag = 'scoped memory for mlp1_forward.1']
  %s0 = inlined_call_operand.vmem [shape: f32[2,128], index: 0, kind: input, shape index: {}]
  %s1 = inlined_call_operand.vmem [shape: f32[128,256], index: 1, kind: input, shape index: {}]
  %s2 = inlined_call_operand.vmem [shape: f32[1,256], index: 2, kind: input, shape index: {}]
  %s3 = inlined_call_operand.vmem [shape: f32[256,256], index: 3, kind: input, shape index: {}]
  %s4 = inlined_call_operand.vmem [shape: f32[1,256], index: 4, kind: input, shape index: {}]
  %s5 = inlined_call_operand.vmem [shape: f32[256,8], index: 5, kind: input, shape index: {}]
  %s6 = inlined_call_operand.<no memory space> [shape: f32[1], index: 6, kind: input, shape index: {}]
  %s7 = inlined_call_operand.vmem [shape: f32[2,8], index: 7, kind: output, shape index: {}]
  %s8 = sld [smem:[#allocation0]]
  $region38: #{mlp1_forward.1} parent=0
    _
  %s10 = ssub.s32 1, %s8
  %s11 = scalar_select 0, %s10, %s8
  %12 = sst [smem:[#allocation2]] %s6
  // Predicated region
  $region2: #{mlp1_forward.1} parent=0 // pred_check
    _
  $region3: #{mlp1_forward.1} parent=0 // pred_check_branch
    %14 = sbr.rel (0) target = $region5
  $region4: #{mlp1_forward.1} parent=0 // pred_region
    _
  $region5: #{mlp1_forward.1} parent=0 // pred_fallthru
    _
  // Predicated region
  $region6: #{mlp1_forward.1} parent=0 // pred_check
    _
  $region7: #{mlp1_forward.1} parent=0 // pred_check_branch
    %16 = sbr.rel (0) target = $region9
  $region8: #{mlp1_forward.1} parent=0 // pred_region
    _
  $region9: #{mlp1_forward.1} parent=0 // pred_fallthru
    _
  // Predicated region
  $region10: #{mlp1_forward.1} parent=0 // pred_check
    _
  $region11: #{mlp1_forward.1} parent=0 // pred_check_branch
    %18 = sbr.rel (0) target = $region13
  $region12: #{mlp1_forward.1} parent=0 // pred_region
    _
  $region13: #{mlp1_forward.1} parent=0 // pred_fallthru
    _
  // Predicated region
  $region14: #{mlp1_forward.1} parent=0 // pred_check
    _
  $region15: #{mlp1_forward.1} parent=0 // pred_check_branch
    %20 = sbr.rel (0) target = $region17
  $region16: #{mlp1_forward.1} parent=0 // pred_region
    _
  $region17: #{mlp1_forward.1} parent=0 // pred_fallthru
    _
  // Predicated region
  $region18: #{mlp1_forward.1} parent=0 // pred_check
    _
  $region19: #{mlp1_forward.1} parent=0 // pred_check_branch
    %22 = sbr.rel (0) target = $region21
  $region20: #{mlp1_forward.1} parent=0 // pred_region
    _
  $region21: #{mlp1_forward.1} parent=0 // pred_fallthru
    _
  // Predicated region
  $region22: #{mlp1_forward.1} parent=0 // pred_check
    _
  $region23: #{mlp1_forward.1} parent=0 // pred_check_branch
    %24 = sbr.rel (0) target = $region25
  $region24: #{mlp1_forward.1} parent=0 // pred_region
    _
  $region25: #{mlp1_forward.1} parent=0 // pred_fallthru
    _
  // Predicated region
  $region26: #{mlp1_forward.1} parent=0 // pred_check
    _
  $region27: #{mlp1_forward.1} parent=0 // pred_check_branch
    %26 = sbr.rel (0) target = $region29
  $region28: #{mlp1_forward.1} parent=0 // pred_region
    _
  $region29: #{mlp1_forward.1} parent=0 // pred_fallthru
    _
  %v27 = vld [vmem:[%s0] sm:$0x3]
  %v28 = vld [vmem:[%s1] sm:$0xff]
  %v29 = vld [vmem:[%s1 + $0x8] sm:$0xff]
  %v30 = vld [vmem:[%s1 + $0x10] sm:$0xff]
  %v31 = vld [vmem:[%s1 + $0x18] sm:$0xff]
  %v32 = vld [vmem:[%s1 + $0x20] sm:$0xff]
  %v33 = vld [vmem:[%s1 + $0x28] sm:$0xff]
  %v34 = vld [vmem:[%s1 + $0x30] sm:$0xff]
  %v35 = vld [vmem:[%s1 + $0x38] sm:$0xff]
  %v36 = vld [vmem:[%s1 + $0x40] sm:$0xff]
  %v37 = vld [vmem:[%s1 + $0x48] sm:$0xff]
  %v38 = vld [vmem:[%s1 + $0x50] sm:$0xff]
  %v39 = vld [vmem:[%s1 + $0x58] sm:$0xff]
  %v40 = vld [vmem:[%s1 + $0x60] sm:$0xff]
  %v41 = vld [vmem:[%s1 + $0x68] sm:$0xff]
  %v42 = vld [vmem:[%s1 + $0x70] sm:$0xff]
  %v43 = vld [vmem:[%s1 + $0x78] sm:$0xff]
  %v44 = vld [vmem:[%s1 + $0x80] sm:$0xff]
  %v45 = vld [vmem:[%s1 + $0x88] sm:$0xff]
  %v46 = vld [vmem:[%s1 + $0x90] sm:$0xff]
  %v47 = vld [vmem:[%s1 + $0x98] sm:$0xff]
  %v48 = vld [vmem:[%s1 + $0xa0] sm:$0xff]
  %v49 = vld [vmem:[%s1 + $0xa8] sm:$0xff]
  %v50 = vld [vmem:[%s1 + $0xb0] sm:$0xff]
  %v51 = vld [vmem:[%s1 + $0xb8] sm:$0xff]
  %v52 = vld [vmem:[%s1 + $0xc0] sm:$0xff]
  %v53 = vld [vmem:[%s1 + $0xc8] sm:$0xff]
  %v54 = vld [vmem:[%s1 + $0xd0] sm:$0xff]
  %v55 = vld [vmem:[%s1 + $0xd8] sm:$0xff]
  %v56 = vld [vmem:[%s1 + $0xe0] sm:$0xff]
  %v57 = vld [vmem:[%s1 + $0xe8] sm:$0xff]
  %v58 = vld [vmem:[%s1 + $0xf0] sm:$0xff]
  %v59 = vld [vmem:[%s1 + $0xf8] sm:$0xff]
  %v60 = vld [vmem:[%s2] sm:$0x3]
  %v62 = vlaneseq
  %v63 = vshrl.u32 %v62, 7
  %v64 = vsub.s32 0, %v63
  %v65 = vrot.slane %v60, %v64
  %v66 = vlaneseq
  %v67 = vshrl.u32 %v66, 7
  %v68 = vsub.s32 1, %v67
  %v69 = vrot.slane %v60, %v68
  %72 = vmatprep.subr.mxu0 %v29
  %73 = vmatpush1.msra.mxu0 %v28
  %74 = vmatprep.subr.mxu0 %v31
  %75 = vmatpush1.msra.mxu0 %v30
  %76 = vmatprep.subr.mxu0 %v33
  %77 = vmatpush1.msra.mxu0 %v32
  %78 = vmatprep.subr.mxu0 %v35
  %79 = vmatpush1.msra.mxu0 %v34
  %80 = vmatprep.subr.mxu0 %v37
  %81 = vmatpush1.msra.mxu0 %v36
  %82 = vmatprep.subr.mxu0 %v39
  %83 = vmatpush1.msra.mxu0 %v38
  %84 = vmatprep.subr.mxu0 %v41
  %85 = vmatpush1.msra.mxu0 %v40
  %86 = vmatprep.subr.mxu0 %v43
  %87 = vmatpush1.msra.mxu0 %v42
  %88 = vmatprep.subr.mxu0 %v45
  %89 = vmatpush1.msra.mxu0 %v44
  %90 = vmatprep.subr.mxu0 %v47
  %91 = vmatpush1.msra.mxu0 %v46
  %92 = vmatprep.subr.mxu0 %v49
  %93 = vmatpush1.msra.mxu0 %v48
  %94 = vmatprep.subr.mxu0 %v51
  %95 = vmatpush1.msra.mxu0 %v50
  %96 = vmatprep.subr.mxu0 %v53
  %97 = vmatpush1.msra.mxu0 %v52
  %98 = vmatprep.subr.mxu0 %v55
  %99 = vmatpush1.msra.mxu0 %v54
  %100 = vmatprep.subr.mxu0 %v57
  %101 = vmatpush1.msra.mxu0 %v56
  %102 = vmatprep.subr.mxu0 %v59
  %103 = vmatpush1.msra.mxu0 %v58
  %104 = vmatprep.subr.mxu0 0.0
  %105 = vmatpush1.msra.mxu0 0.0
  %106 = vmatprep.subr.mxu0 0.0
  %107 = vmatpush1.msra.mxu0 0.0
  %108 = vmatprep.subr.mxu0 0.0
  %109 = vmatpush1.msra.mxu0 0.0
  %110 = vmatprep.subr.mxu0 0.0
  %111 = vmatpush1.msra.mxu0 0.0
  %112 = vmatprep.subr.mxu0 0.0
  %113 = vmatpush1.msra.mxu0 0.0
  %114 = vmatprep.subr.mxu0 0.0
  %115 = vmatpush1.msra.mxu0 0.0
  %116 = vmatprep.subr.mxu0 0.0
  %117 = vmatpush1.msra.mxu0 0.0
  %118 = vmatprep.subr.mxu0 0.0
  %119 = vmatpush1.msra.mxu0 0.0
  %120 = vmatprep.subr.mxu0 0.0
  %121 = vmatpush1.msra.mxu0 0.0
  %122 = vmatprep.subr.mxu0 0.0
  %123 = vmatpush1.msra.mxu0 0.0
  %124 = vmatprep.subr.mxu0 0.0
  %125 = vmatpush1.msra.mxu0 0.0
  %126 = vmatprep.subr.mxu0 0.0
  %127 = vmatpush1.msra.mxu0 0.0
  %128 = vmatprep.subr.mxu0 0.0
  %129 = vmatpush1.msra.mxu0 0.0
  %130 = vmatprep.subr.mxu0 0.0
  %131 = vmatpush1.msra.mxu0 0.0
  %132 = vmatprep.subr.mxu0 0.0
  %133 = vmatpush1.msra.mxu0 0.0
  %134 = vmatprep.subr.mxu0 0.0
  %135 = vmatpush1.msra.mxu0 0.0
  %136 = vmatprep.mubr.f32.mxu0 0.0
  %137 = vmatmul.mubr.f32.gmra.mrb[0].mxu0 %v27
  %v138 = vpop.f32.mrb[0].mxu0
  %v139 = vadd.f32 %v65, %v138
  %v140 = vpop.f32.mrb[0].mxu0
  %v141 = vadd.f32 %v69, %v140
  %142 = vdwg.mxu0
  %v143 = vtanh.pop %v139
  %v144 = vtanh.pop %v141
  %v145 = vld [vmem:[%s3] sm:$0xff]
  %v146 = vld [vmem:[%s3 + $0x8] sm:$0xff]
  %v147 = vld [vmem:[%s3 + $0x10] sm:$0xff]
  %v148 = vld [vmem:[%s3 + $0x18] sm:$0xff]
  %v149 = vld [vmem:[%s3 + $0x20] sm:$0xff]
  %v150 = vld [vmem:[%s3 + $0x28] sm:$0xff]
  %v151 = vld [vmem:[%s3 + $0x30] sm:$0xff]
  %v152 = vld [vmem:[%s3 + $0x38] sm:$0xff]
  %v153 = vld [vmem:[%s3 + $0x40] sm:$0xff]
  %v154 = vld [vmem:[%s3 + $0x48] sm:$0xff]
  %v155 = vld [vmem:[%s3 + $0x50] sm:$0xff]
  %v156 = vld [vmem:[%s3 + $0x58] sm:$0xff]
  %v157 = vld [vmem:[%s3 + $0x60] sm:$0xff]
  %v158 = vld [vmem:[%s3 + $0x68] sm:$0xff]
  %v159 = vld [vmem:[%s3 + $0x70] sm:$0xff]
  %v160 = vld [vmem:[%s3 + $0x78] sm:$0xff]
  %v161 = vld [vmem:[%s3 + $0x80] sm:$0xff]
  %v162 = vld [vmem:[%s3 + $0x88] sm:$0xff]
  %v163 = vld [vmem:[%s3 + $0x90] sm:$0xff]
  %v164 = vld [vmem:[%s3 + $0x98] sm:$0xff]
  %v165 = vld [vmem:[%s3 + $0xa0] sm:$0xff]
  %v166 = vld [vmem:[%s3 + $0xa8] sm:$0xff]
  %v167 = vld [vmem:[%s3 + $0xb0] sm:$0xff]
  %v168 = vld [vmem:[%s3 + $0xb8] sm:$0xff]
  %v169 = vld [vmem:[%s3 + $0xc0] sm:$0xff]
  %v170 = vld [vmem:[%s3 + $0xc8] sm:$0xff]
  %v171 = vld [vmem:[%s3 + $0xd0] sm:$0xff]
  %v172 = vld [vmem:[%s3 + $0xd8] sm:$0xff]
  %v173 = vld [vmem:[%s3 + $0xe0] sm:$0xff]
  %v174 = vld [vmem:[%s3 + $0xe8] sm:$0xff]
  %v175 = vld [vmem:[%s3 + $0xf0] sm:$0xff]
  %v176 = vld [vmem:[%s3 + $0xf8] sm:$0xff]
  %v177 = vld [vmem:[%s3 + $0x100] sm:$0xff]
  %v178 = vld [vmem:[%s3 + $0x108] sm:$0xff]
  %v179 = vld [vmem:[%s3 + $0x110] sm:$0xff]
  %v180 = vld [vmem:[%s3 + $0x118] sm:$0xff]
  %v181 = vld [vmem:[%s3 + $0x120] sm:$0xff]
  %v182 = vld [vmem:[%s3 + $0x128] sm:$0xff]
  %v183 = vld [vmem:[%s3 + $0x130] sm:$0xff]
  %v184 = vld [vmem:[%s3 + $0x138] sm:$0xff]
  %v185 = vld [vmem:[%s3 + $0x140] sm:$0xff]
  %v186 = vld [vmem:[%s3 + $0x148] sm:$0xff]
  %v187 = vld [vmem:[%s3 + $0x150] sm:$0xff]
  %v188 = vld [vmem:[%s3 + $0x158] sm:$0xff]
  %v189 = vld [vmem:[%s3 + $0x160] sm:$0xff]
  %v190 = vld [vmem:[%s3 + $0x168] sm:$0xff]
  %v191 = vld [vmem:[%s3 + $0x170] sm:$0xff]
  %v192 = vld [vmem:[%s3 + $0x178] sm:$0xff]
  %v193 = vld [vmem:[%s3 + $0x180] sm:$0xff]
  %v194 = vld [vmem:[%s3 + $0x188] sm:$0xff]
  %v195 = vld [vmem:[%s3 + $0x190] sm:$0xff]
  %v196 = vld [vmem:[%s3 + $0x198] sm:$0xff]
  %v197 = vld [vmem:[%s3 + $0x1a0] sm:$0xff]
  %v198 = vld [vmem:[%s3 + $0x1a8] sm:$0xff]
  %v199 = vld [vmem:[%s3 + $0x1b0] sm:$0xff]
  %v200 = vld [vmem:[%s3 + $0x1b8] sm:$0xff]
  %v201 = vld [vmem:[%s3 + $0x1c0] sm:$0xff]
  %v202 = vld [vmem:[%s3 + $0x1c8] sm:$0xff]
  %v203 = vld [vmem:[%s3 + $0x1d0] sm:$0xff]
  %v204 = vld [vmem:[%s3 + $0x1d8] sm:$0xff]
  %v205 = vld [vmem:[%s3 + $0x1e0] sm:$0xff]
  %v206 = vld [vmem:[%s3 + $0x1e8] sm:$0xff]
  %v207 = vld [vmem:[%s3 + $0x1f0] sm:$0xff]
  %v208 = vld [vmem:[%s3 + $0x1f8] sm:$0xff]
  %v209 = vld [vmem:[%s4] sm:$0x3]
  %v211 = vlaneseq
  %v212 = vshrl.u32 %v211, 7
  %v213 = vsub.s32 0, %v212
  %v214 = vrot.slane %v209, %v213
  %v215 = vlaneseq
  %v216 = vshrl.u32 %v215, 7
  %v217 = vsub.s32 1, %v216
  %v218 = vrot.slane %v209, %v217
  %221 = vmatprep.subr.mxu0 %v146
  %222 = vmatpush1.msra.mxu0 %v145
  %223 = vmatprep.subr.mxu0 %v148
  %224 = vmatpush1.msra.mxu0 %v147
  %225 = vmatprep.subr.mxu0 %v150
  %226 = vmatpush1.msra.mxu0 %v149
  %227 = vmatprep.subr.mxu0 %v152
  %228 = vmatpush1.msra.mxu0 %v151
  %229 = vmatprep.subr.mxu0 %v154
  %230 = vmatpush1.msra.mxu0 %v153
  %231 = vmatprep.subr.mxu0 %v156
  %232 = vmatpush1.msra.mxu0 %v155
  %233 = vmatprep.subr.mxu0 %v158
  %234 = vmatpush1.msra.mxu0 %v157
  %235 = vmatprep.subr.mxu0 %v160
  %236 = vmatpush1.msra.mxu0 %v159
  %237 = vmatprep.subr.mxu0 %v162
  %238 = vmatpush1.msra.mxu0 %v161
  %239 = vmatprep.subr.mxu0 %v164
  %240 = vmatpush1.msra.mxu0 %v163
  %241 = vmatprep.subr.mxu0 %v166
  %242 = vmatpush1.msra.mxu0 %v165
  %243 = vmatprep.subr.mxu0 %v168
  %244 = vmatpush1.msra.mxu0 %v167
  %245 = vmatprep.subr.mxu0 %v170
  %246 = vmatpush1.msra.mxu0 %v169
  %247 = vmatprep.subr.mxu0 %v172
  %248 = vmatpush1.msra.mxu0 %v171
  %249 = vmatprep.subr.mxu0 %v174
  %250 = vmatpush1.msra.mxu0 %v173
  %251 = vmatprep.subr.mxu0 %v176
  %252 = vmatpush1.msra.mxu0 %v175
  %253 = vmatprep.subr.mxu0 %v178
  %254 = vmatpush1.msra.mxu0 %v177
  %255 = vmatprep.subr.mxu0 %v180
  %256 = vmatpush1.msra.mxu0 %v179
  %257 = vmatprep.subr.mxu0 %v182
  %258 = vmatpush1.msra.mxu0 %v181
  %259 = vmatprep.subr.mxu0 %v184
  %260 = vmatpush1.msra.mxu0 %v183
  %261 = vmatprep.subr.mxu0 %v186
  %262 = vmatpush1.msra.mxu0 %v185
  %263 = vmatprep.subr.mxu0 %v188
  %264 = vmatpush1.msra.mxu0 %v187
  %265 = vmatprep.subr.mxu0 %v190
  %266 = vmatpush1.msra.mxu0 %v189
  %267 = vmatprep.subr.mxu0 %v192
  %268 = vmatpush1.msra.mxu0 %v191
  %269 = vmatprep.subr.mxu0 %v194
  %270 = vmatpush1.msra.mxu0 %v193
  %271 = vmatprep.subr.mxu0 %v196
  %272 = vmatpush1.msra.mxu0 %v195
  %273 = vmatprep.subr.mxu0 %v198
  %274 = vmatpush1.msra.mxu0 %v197
  %275 = vmatprep.subr.mxu0 %v200
  %276 = vmatpush1.msra.mxu0 %v199
  %277 = vmatprep.subr.mxu0 %v202
  %278 = vmatpush1.msra.mxu0 %v201
  %279 = vmatprep.subr.mxu0 %v204
  %280 = vmatpush1.msra.mxu0 %v203
  %281 = vmatprep.subr.mxu0 %v206
  %282 = vmatpush1.msra.mxu0 %v205
  %283 = vmatprep.subr.mxu0 %v208
  %284 = vmatpush1.msra.mxu0 %v207
  %285 = vmatprep.mubr.f32.mxu0 %v144
  %286 = vmatmul.mubr.f32.gmra.mrb[0].mxu0 %v143
  %v287 = vpop.f32.mrb[0].mxu0
  %v288 = vadd.f32 %v214, %v287
  %v289 = vpop.f32.mrb[0].mxu0
  %v290 = vadd.f32 %v218, %v289
  %291 = vdwg.mxu0
  %v292 = vtanh.pop %v288
  %v293 = vtanh.pop %v290
  %v294 = vld [vmem:[%s5] sm:$0xff]
  %v295 = vld [vmem:[%s5 + $0x8] sm:$0xff]
  %v296 = vld [vmem:[%s5 + $0x10] sm:$0xff]
  %v297 = vld [vmem:[%s5 + $0x18] sm:$0xff]
  %v298 = vld [vmem:[%s5 + $0x20] sm:$0xff]
  %v299 = vld [vmem:[%s5 + $0x28] sm:$0xff]
  %v300 = vld [vmem:[%s5 + $0x30] sm:$0xff]
  %v301 = vld [vmem:[%s5 + $0x38] sm:$0xff]
  %v302 = vld [vmem:[%s5 + $0x40] sm:$0xff]
  %v303 = vld [vmem:[%s5 + $0x48] sm:$0xff]
  %v304 = vld [vmem:[%s5 + $0x50] sm:$0xff]
  %v305 = vld [vmem:[%s5 + $0x58] sm:$0xff]
  %v306 = vld [vmem:[%s5 + $0x60] sm:$0xff]
  %v307 = vld [vmem:[%s5 + $0x68] sm:$0xff]
  %v308 = vld [vmem:[%s5 + $0x70] sm:$0xff]
  %v309 = vld [vmem:[%s5 + $0x78] sm:$0xff]
  %v310 = vld [vmem:[%s5 + $0x80] sm:$0xff]
  %v311 = vld [vmem:[%s5 + $0x88] sm:$0xff]
  %v312 = vld [vmem:[%s5 + $0x90] sm:$0xff]
  %v313 = vld [vmem:[%s5 + $0x98] sm:$0xff]
  %v314 = vld [vmem:[%s5 + $0xa0] sm:$0xff]
  %v315 = vld [vmem:[%s5 + $0xa8] sm:$0xff]
  %v316 = vld [vmem:[%s5 + $0xb0] sm:$0xff]
  %v317 = vld [vmem:[%s5 + $0xb8] sm:$0xff]
  %v318 = vld [vmem:[%s5 + $0xc0] sm:$0xff]
  %v319 = vld [vmem:[%s5 + $0xc8] sm:$0xff]
  %v320 = vld [vmem:[%s5 + $0xd0] sm:$0xff]
  %v321 = vld [vmem:[%s5 + $0xd8] sm:$0xff]
  %v322 = vld [vmem:[%s5 + $0xe0] sm:$0xff]
  %v323 = vld [vmem:[%s5 + $0xe8] sm:$0xff]
  %v324 = vld [vmem:[%s5 + $0xf0] sm:$0xff]
  %v325 = vld [vmem:[%s5 + $0xf8] sm:$0xff]
  %s326 = sld [smem:[#allocation2]]
  %v327 = vstv %s326
  %328 = vmatprep.subr.mxu0 0.0
  %329 = vmatpush1.msra.mxu0 %v294
  %330 = vmatprep.subr.mxu0 0.0
  %331 = vmatpush1.msra.mxu0 %v295
  %332 = vmatprep.subr.mxu0 0.0
  %333 = vmatpush1.msra.mxu0 %v296
  %334 = vmatprep.subr.mxu0 0.0
  %335 = vmatpush1.msra.mxu0 %v297
  %336 = vmatprep.subr.mxu0 0.0
  %337 = vmatpush1.msra.mxu0 %v298
  %338 = vmatprep.subr.mxu0 0.0
  %339 = vmatpush1.msra.mxu0 %v299
  %340 = vmatprep.subr.mxu0 0.0
  %341 = vmatpush1.msra.mxu0 %v300
  %342 = vmatprep.subr.mxu0 0.0
  %343 = vmatpush1.msra.mxu0 %v301
  %344 = vmatprep.subr.mxu0 0.0
  %345 = vmatpush1.msra.mxu0 %v302
  %346 = vmatprep.subr.mxu0 0.0
  %347 = vmatpush1.msra.mxu0 %v303
  %348 = vmatprep.subr.mxu0 0.0
  %349 = vmatpush1.msra.mxu0 %v304
  %350 = vmatprep.subr.mxu0 0.0
  %351 = vmatpush1.msra.mxu0 %v305
  %352 = vmatprep.subr.mxu0 0.0
  %353 = vmatpush1.msra.mxu0 %v306
  %354 = vmatprep.subr.mxu0 0.0
  %355 = vmatpush1.msra.mxu0 %v307
  %356 = vmatprep.subr.mxu0 0.0
  %357 = vmatpush1.msra.mxu0 %v308
  %358 = vmatprep.subr.mxu0 0.0
  %359 = vmatpush1.msra.mxu0 %v309
  %360 = vmatprep.subr.mxu0 0.0
  %361 = vmatpush1.msra.mxu0 %v310
  %362 = vmatprep.subr.mxu0 0.0
  %363 = vmatpush1.msra.mxu0 %v311
  %364 = vmatprep.subr.mxu0 0.0
  %365 = vmatpush1.msra.mxu0 %v312
  %366 = vmatprep.subr.mxu0 0.0
  %367 = vmatpush1.msra.mxu0 %v313
  %368 = vmatprep.subr.mxu0 0.0
  %369 = vmatpush1.msra.mxu0 %v314
  %370 = vmatprep.subr.mxu0 0.0
  %371 = vmatpush1.msra.mxu0 %v315
  %372 = vmatprep.subr.mxu0 0.0
  %373 = vmatpush1.msra.mxu0 %v316
  %374 = vmatprep.subr.mxu0 0.0
  %375 = vmatpush1.msra.mxu0 %v317
  %376 = vmatprep.subr.mxu0 0.0
  %377 = vmatpush1.msra.mxu0 %v318
  %378 = vmatprep.subr.mxu0 0.0
  %379 = vmatpush1.msra.mxu0 %v319
  %380 = vmatprep.subr.mxu0 0.0
  %381 = vmatpush1.msra.mxu0 %v320
  %382 = vmatprep.subr.mxu0 0.0
  %383 = vmatpush1.msra.mxu0 %v321
  %384 = vmatprep.subr.mxu0 0.0
  %385 = vmatpush1.msra.mxu0 %v322
  %386 = vmatprep.subr.mxu0 0.0
  %387 = vmatpush1.msra.mxu0 %v323
  %388 = vmatprep.subr.mxu0 0.0
  %389 = vmatpush1.msra.mxu0 %v324
  %390 = vmatprep.subr.mxu0 0.0
  %391 = vmatpush1.msra.mxu0 %v325
  %392 = vmatprep.mubr.f32.mxu0 %v293
  %393 = vmatmul.mubr.f32.gmra.mrb[0].mxu0 %v292
  %v394 = vpop.f32.mrb[0].mxu0
  %v395 = vadd.f32 %v327, %v394
  %v396 = vpop.f32.mrb[0].mxu0
  %397 = vdwg.mxu0
  %vm398 = vcmask 58368
  %399 = vst.msk [vmem:[%s7] sm:$0x3] %vm398, %v395
  // Predicated region
  $region30: #{mlp1_forward.1} parent=0 // pred_check
    _
  $region31: #{mlp1_forward.1} parent=0 // pred_check_branch
    %401 = sbr.rel (0) target = $region33
  $region32: #{mlp1_forward.1} parent=0 // pred_region
    _
  $region33: #{mlp1_forward.1} parent=0 // pred_fallthru
    _
  // Predicated region
  $region34: #{mlp1_forward.1} parent=0 // pred_check
    _
  $region35: #{mlp1_forward.1} parent=0 // pred_check_branch
    %403 = sbr.rel (0) target = $region37
  $region36: #{mlp1_forward.1} parent=0 // pred_region
    _
  $region37: #{mlp1_forward.1} parent=0 // pred_fallthru
    _

</llo_original>
